<compile_context>
chip_gen: v5e
topology: v5e:2x2
jax: 0.10.0
libtpu: 0.0.40
codegen_flags: <defaults>
</compile_context>

<pallas_src>
import functools
import math

import jax
import jax.numpy as jnp
from jax.experimental import pallas as pl
from jax.experimental.pallas import tpu as pltpu


_SUBLANES = 8

# Robust symbol lookup (strings are also accepted for dimension_semantics).
_ARBITRARY = getattr(pltpu, "ARBITRARY", "arbitrary")
_CORE_PARALLEL = getattr(pltpu, "CORE_PARALLEL", getattr(pltpu, "PARALLEL", "parallel"))


def _chip_params():
    """Generation-aware tiling parameters (safe defaults if detection fails)."""
    kind = ""
    try:
        kind = jax.devices()[0].device_kind.lower()
    except Exception:
        pass
    if "v7" in kind:
        # 2 TensorCores, 64 MiB physical VMEM per TC.
        return dict(num_splits=2, block_bytes=4 << 20, vmem_limit=40 << 20)
    # v5e / v6e (and unknown): single TensorCore, 128 MiB physical VMEM.
    return dict(num_splits=1, block_bytes=6 << 20, vmem_limit=64 << 20)


def _l1_sum_kernel(x_ref, y_ref, o_ref, acc_ref, *, tm, total_rows):
    """Accumulates sum(|y - x|) over this core's share of row blocks."""
    c = pl.program_id(0)
    i = pl.program_id(1)
    n_i = pl.num_programs(1)

    @pl.when(i == 0)
    def _():
        acc_ref[...] = jnp.zeros_like(acc_ref)

    blk = c * n_i + i                       # unclamped global block index
    is_full = (blk + 1) * tm <= total_rows  # interior block: no masking needed

    def _fold(d):
        # Vector accumulator in VMEM: sublane-group fold when rows are a multiple of 8
        # (pure VPU adds), else a lane-parallel (1, K) accumulator.
        # NOTE: Mosaic fuses |y - x| into the reduction here; if a future toolchain
        # materializes the (tm, K) temporary, rewrite as a fori_loop over 8-row groups.
        if acc_ref.shape[0] == _SUBLANES:
            return jnp.sum(d.reshape(tm // _SUBLANES, _SUBLANES, d.shape[-1]), axis=0)
        return jnp.sum(d, axis=0, keepdims=True)

    @pl.when(is_full)
    def _():
        d = jnp.abs(y_ref[...].astype(jnp.float32) - x_ref[...].astype(jnp.float32))
        acc_ref[...] += _fold(d)

    @pl.when(jnp.logical_not(is_full))
    def _():
        # Ragged last block / clamped duplicate block: zero rows past the true count.
        d = jnp.abs(y_ref[...].astype(jnp.float32) - x_ref[...].astype(jnp.float32))
        row_ids = blk * tm + jax.lax.broadcasted_iota(jnp.int32, (tm, 1), 0)
        d = jnp.where(row_ids < total_rows, d, 0.0)
        acc_ref[...] += _fold(d)

    # One cross-lane/sublane reduce per core, only on the last step; broadcast the
    # partial sum over this core's private (8, 128) output tile.
    @pl.when(i == n_i - 1)
    def _():
        o_ref[...] = jnp.zeros_like(o_ref) + jnp.sum(acc_ref[...])


def _choose_layout(shape):
    """Pick a (rows, lanes) 2-D view of the input (pad-free reshapes only)."""
    n = math.prod(shape)
    k_nat = int(shape[-1])
    if k_nat % 128 != 0:
        # Exact, pad-free lane-dense flattening (free row-major reshape, no jnp.pad).
        for lane in (2048, 1024, 512, 256, 128):
            if n % lane == 0:
                return n // lane, lane
    # Fall back: merge leading dims only (always a free reshape); the natural freq
    # axis stays on the lanes.
    return n // k_nat, k_nat


def _choose_row_tile(m, k, itemsize, block_bytes):
    rows = max(1, block_bytes // max(1, k * itemsize))
    if m >= _SUBLANES:
        rows = min(rows, m)
        rows = max(_SUBLANES, rows - rows % _SUBLANES)  # multiple of 8
    else:
        rows = m  # block second-to-last dim == full array dim -> still legal
    return rows


def log_stft_magnitude_loss(x, y, *, force_kernel=False, min_kernel_elements=1 << 16,
                            block_bytes_override=None):
    """mean(|y - x|) (== F.l1_loss(y, x)) computed with a Pallas TPU kernel."""
    if x.shape != y.shape:
        raise ValueError(f"shape mismatch: {x.shape} vs {y.shape}")
    total_n = x.size

    # Tiny inputs: fixed pallas_call + pipeline prologue cost dominates; let XLA fuse.
    if (not force_kernel) and total_n < min_kernel_elements:
        return jnp.mean(jnp.abs(y.astype(jnp.float32) - x.astype(jnp.float32)))

    params = _chip_params()
    block_bytes = block_bytes_override or params["block_bytes"]
    vmem_limit = params["vmem_limit"]

    m, k = _choose_layout(x.shape)
    x2 = x.reshape(m, k)
    y2 = y.reshape(m, k)
    itemsize = max(x2.dtype.itemsize, y2.dtype.itemsize)
    tm = _choose_row_tile(m, k, itemsize, block_bytes)

    # Robustness guard: degenerate "few huge rows" shapes that miss the lane-dense
    # flatten would produce a single block that pressures/overflows VMEM.
    # TODO(synk): add a column-tiling path for extremely wide single-row inputs.
    if 4 * tm * k * itemsize + _SUBLANES * k * 4 > vmem_limit - (4 << 20):
        return jnp.mean(jnp.abs(y.astype(jnp.float32) - x.astype(jnp.float32)))

    g = -(-m // tm)                         # number of real row blocks
    splits = params["num_splits"]
    if g < 2 * splits:
        splits = 1                          # not enough blocks to split across cores
    g_per_core = -(-g // splits)            # blocks per core (last ones may be dups)
    last_blk = g - 1

    def in_map(c, i):
        # Clamp so no DMA ever starts past the array; duplicated blocks are zeroed
        # inside the kernel via their (unclamped) row ids.
        return (jnp.minimum(c * g_per_core + i, last_blk), 0)

    acc_rows = _SUBLANES if tm % _SUBLANES == 0 else 1
    kernel = functools.partial(_l1_sum_kernel, tm=tm, total_rows=m)

    if splits > 1:
        dim_sems = (_CORE_PARALLEL, _ARBITRARY)   # genuinely shard axis 0 across TCs
    else:
        dim_sems = (_ARBITRARY, _ARBITRARY)

    partials = pl.pallas_call(
        kernel,
        out_shape=jax.ShapeDtypeStruct((splits * _SUBLANES, 128), jnp.float32),
        grid_spec=pltpu.PrefetchScalarGridSpec(
            num_scalar_prefetch=0,
            grid=(splits, g_per_core),
            in_specs=[
                pl.BlockSpec((tm, k), in_map),
                pl.BlockSpec((tm, k), in_map),
            ],
            out_specs=pl.BlockSpec((_SUBLANES, 128), lambda c, i: (c, 0)),
            scratch_shapes=[pltpu.VMEM((acc_rows, k), jnp.float32)],
        ),
        compiler_params=pltpu.CompilerParams(
            dimension_semantics=dim_sems,
            vmem_limit_bytes=vmem_limit,
        ),
    )(x2, y2)

    # One partial sum per core (element [8*c, 0] of its tile); add and normalize.
    total = jnp.sum(partials[::_SUBLANES, 0])
    return total / jnp.float32(total_n)


if __name__ == "__main__":
    key = jax.random.PRNGKey(0)
    kx, ky = jax.random.split(key)

    # (B, #frames, #freq_bins) magnitude spectrograms (module-spec small shape).
    B, frames, freq_bins = 2, 8, 16
    x = jax.random.uniform(kx, (B, frames, freq_bins), dtype=jnp.float32)
    y = jax.random.uniform(ky, (B, frames, freq_bins), dtype=jnp.float32)

    loss = log_stft_magnitude_loss(x, y, force_kernel=True)
    loss = jax.block_until_ready(loss)
    ref = jnp.mean(jnp.abs(y - x))
    assert jnp.allclose(loss, ref, rtol=1e-5, atol=1e-6), (loss, ref)

    # Second check: realistic STFT width (513 = n_fft/2 + 1); a small block override
    # forces a multi-block pipeline and exercises the ragged-row masked branch.
    kx2, ky2 = jax.random.split(ky)
    x2 = jax.random.uniform(kx2, (2, 119, 513), dtype=jnp.float32)
    y2 = jax.random.uniform(ky2, (2, 119, 513), dtype=jnp.float32)
    loss2 = jax.block_until_ready(
        log_stft_magnitude_loss(x2, y2, force_kernel=True,
                                block_bytes_override=64 * 1024))
    ref2 = jnp.mean(jnp.abs(y2 - x2))
    assert jnp.allclose(loss2, ref2, rtol=1e-5, atol=1e-6), (loss2, ref2)

    print("KERNEL_OK")
</pallas_src>

<mosaic_0001>
module attributes {stable_mosaic.version = 11 : i64} {
  func.func @_l1_sum_kernel(%arg0: i32, %arg1: i32, %arg2: memref<1x256xf32, #tpu.memory_space<vmem>>, %arg3: memref<1x256xf32, #tpu.memory_space<vmem>>, %arg4: memref<8x128xf32, #tpu.memory_space<vmem>>, %arg5: memref<1x256xf32, #tpu.memory_space<vmem>>) attributes {dimension_semantics = [#tpu.dimension_semantics<arbitrary>, #tpu.dimension_semantics<arbitrary>], iteration_bounds = array<i64: 1, 1>, scalar_prefetch = 0 : i64, scratch_operands = 1 : i64, tpu.core_type = #tpu.core_type<tc>, window_params = [{transform_indices = @transform_0, window_bounds = array<i64: 1, 256>}, {transform_indices = @transform_1, window_bounds = array<i64: 1, 256>}, {transform_indices = @transform_2, window_bounds = array<i64: 8, 128>}]} {
    %c0_i32 = arith.constant 0 : i32
    %0 = arith.cmpi eq, %arg1, %c0_i32 : i32
    %1 = arith.extui %0 : i1 to i32
    %c0_i32_0 = arith.constant 0 : i32
    %2 = arith.cmpi ne, %1, %c0_i32_0 : i32
    scf.if %2 {
      %cst = arith.constant 0.000000e+00 : f32
      %16 = vector.broadcast %cst : f32 to vector<1x256xf32>
      %c0 = arith.constant 0 : index
      %c0_8 = arith.constant 0 : index
      %17 = vector.load %arg5[%c0, %c0_8] : memref<1x256xf32, #tpu.memory_space<vmem>>, vector<1x256xf32>
      tpu.vector_store %arg5[%c0, %c0_8], %16 {strides = array<i32>} : memref<1x256xf32, #tpu.memory_space<vmem>>, vector<1x256xf32>,
    } else {
    }
    %c1_i32 = arith.constant 1 : i32
    %3 = arith.muli %arg0, %c1_i32 : i32
    %4 = arith.addi %3, %arg1 : i32
    %c1_i32_1 = arith.constant 1 : i32
    %5 = arith.addi %4, %c1_i32_1 : i32
    %c1_i32_2 = arith.constant 1 : i32
    %6 = arith.muli %5, %c1_i32_2 : i32
    %c1_i32_3 = arith.constant 1 : i32
    %7 = arith.cmpi sle, %6, %c1_i32_3 : i32
    %8 = arith.extui %7 : i1 to i32
    %c0_i32_4 = arith.constant 0 : i32
    %9 = arith.cmpi ne, %8, %c0_i32_4 : i32
    scf.if %9 {
      %c0 = arith.constant 0 : index
      %c0_8 = arith.constant 0 : index
      %16 = vector.load %arg3[%c0, %c0_8] : memref<1x256xf32, #tpu.memory_space<vmem>>, vector<1x256xf32>
      %c0_9 = arith.constant 0 : index
      %c0_10 = arith.constant 0 : index
      %17 = vector.load %arg2[%c0_9, %c0_10] : memref<1x256xf32, #tpu.memory_space<vmem>>, vector<1x256xf32>
      %18 = arith.subf %16, %17 : vector<1x256xf32>
      %19 = math.absf %18 : vector<1x256xf32>
      %c0_11 = arith.constant 0 : index
      %c0_12 = arith.constant 0 : index
      %20 = vector.load %arg5[%c0_11, %c0_12] : memref<1x256xf32, #tpu.memory_space<vmem>>, vector<1x256xf32>
      %cst = arith.constant dense<0.000000e+00> : vector<256xf32>
      %21 = vector.multi_reduction <add>, %19, %cst [0] : vector<1x256xf32> to vector<256xf32>
      %22 = vector.shape_cast %21 : vector<256xf32> to vector<1x256xf32>
      %23 = arith.addf %20, %22 : vector<1x256xf32>
      %c0_13 = arith.constant 0 : index
      %c0_14 = arith.constant 0 : index
      %24 = vector.load %arg5[%c0_13, %c0_14] : memref<1x256xf32, #tpu.memory_space<vmem>>, vector<1x256xf32>
      tpu.vector_store %arg5[%c0_13, %c0_14], %23 {strides = array<i32>} : memref<1x256xf32, #tpu.memory_space<vmem>>, vector<1x256xf32>,
    } else {
    }
    %true = arith.constant true
    %10 = arith.xori %7, %true : i1
    %11 = arith.extui %10 : i1 to i32
    %c0_i32_5 = arith.constant 0 : i32
    %12 = arith.cmpi ne, %11, %c0_i32_5 : i32
    scf.if %12 {
      %c0 = arith.constant 0 : index
      %c0_8 = arith.constant 0 : index
      %16 = vector.load %arg3[%c0, %c0_8] : memref<1x256xf32, #tpu.memory_space<vmem>>, vector<1x256xf32>
      %c0_9 = arith.constant 0 : index
      %c0_10 = arith.constant 0 : index
      %17 = vector.load %arg2[%c0_9, %c0_10] : memref<1x256xf32, #tpu.memory_space<vmem>>, vector<1x256xf32>
      %18 = arith.subf %16, %17 : vector<1x256xf32>
      %19 = math.absf %18 : vector<1x256xf32>
      %c1_i32_11 = arith.constant 1 : i32
      %20 = arith.muli %4, %c1_i32_11 : i32
      %21 = tpu.iota {dimensions = array<i32: 0>} : vector<1x1xi32>
      %22 = vector.broadcast %20 : i32 to vector<1x1xi32>
      %23 = arith.addi %22, %21 : vector<1x1xi32>
      %c1_i32_12 = arith.constant 1 : i32
      %24 = vector.broadcast %c1_i32_12 : i32 to vector<1x1xi32>
      %25 = arith.cmpi slt, %23, %24 : vector<1x1xi32>
      %cst = arith.constant 0.000000e+00 : f32
      %26 = vector.shape_cast %25 : vector<1x1xi1> to vector<1x1xi1>
      %27 = vector.broadcast %26 : vector<1x1xi1> to vector<1x256xi1>
      %28 = vector.broadcast %cst : f32 to vector<1x256xf32>
      %29 = arith.select %27, %19, %28 : vector<1x256xi1>, vector<1x256xf32>
      %c0_13 = arith.constant 0 : index
      %c0_14 = arith.constant 0 : index
      %30 = vector.load %arg5[%c0_13, %c0_14] : memref<1x256xf32, #tpu.memory_space<vmem>>, vector<1x256xf32>
      %cst_15 = arith.constant dense<0.000000e+00> : vector<256xf32>
      %31 = vector.multi_reduction <add>, %29, %cst_15 [0] : vector<1x256xf32> to vector<256xf32>
      %32 = vector.shape_cast %31 : vector<256xf32> to vector<1x256xf32>
      %33 = arith.addf %30, %32 : vector<1x256xf32>
      %c0_16 = arith.constant 0 : index
      %c0_17 = arith.constant 0 : index
      %34 = vector.load %arg5[%c0_16, %c0_17] : memref<1x256xf32, #tpu.memory_space<vmem>>, vector<1x256xf32>
      tpu.vector_store %arg5[%c0_16, %c0_17], %33 {strides = array<i32>} : memref<1x256xf32, #tpu.memory_space<vmem>>, vector<1x256xf32>,
    } else {
    }
    %c0_i32_6 = arith.constant 0 : i32
    %13 = arith.cmpi eq, %arg1, %c0_i32_6 : i32
    %14 = arith.extui %13 : i1 to i32
    %c0_i32_7 = arith.constant 0 : i32
    %15 = arith.cmpi ne, %14, %c0_i32_7 : i32
    scf.if %15 {
      %cst = arith.constant 0.000000e+00 : f32
      %16 = vector.broadcast %cst : f32 to vector<8x128xf32>
      %c0 = arith.constant 0 : index
      %c0_8 = arith.constant 0 : index
      %17 = vector.load %arg5[%c0, %c0_8] : memref<1x256xf32, #tpu.memory_space<vmem>>, vector<1x256xf32>
      %18 = vector.shape_cast %17 : vector<1x256xf32> to vector<1x1x256xf32>
      %cst_9 = arith.constant dense<0.000000e+00> : vector<1xf32>
      %19 = vector.multi_reduction <add>, %18, %cst_9 [1, 2] : vector<1x1x256xf32> to vector<1xf32>
      %20 = vector.shape_cast %19 : vector<1xf32> to vector<1x1x1xf32>
      %21 = vector.extract %20[0, 0, 0] : f32 from vector<1x1x1xf32>
      %22 = vector.broadcast %21 : f32 to vector<8x128xf32>
      %23 = arith.addf %16, %22 : vector<8x128xf32>
      %c0_10 = arith.constant 0 : index
      %c0_11 = arith.constant 0 : index
      %24 = vector.load %arg4[%c0_10, %c0_11] : memref<8x128xf32, #tpu.memory_space<vmem>>, vector<8x128xf32>
      tpu.vector_store %arg4[%c0_10, %c0_11], %23 {strides = array<i32>} : memref<8x128xf32, #tpu.memory_space<vmem>>, vector<8x128xf32>,
    } else {
    }
    return
  }
  func.func @transform_0(%arg0: i32, %arg1: i32) -> (i32, i32) {
    %c1_i32 = arith.constant 1 : i32
    %0 = arith.muli %arg0, %c1_i32 : i32
    %1 = arith.addi %0, %arg1 : i32
    %c0_i32 = arith.constant 0 : i32
    %2 = arith.minsi %1, %c0_i32 : i32
    %c0_i32_0 = arith.constant 0 : i32
    %c0_i32_1 = arith.constant 0 : i32
    return %2, %c0_i32_0 : i32, i32
  }
  func.func @transform_1(%arg0: i32, %arg1: i32) -> (i32, i32) {
    %c1_i32 = arith.constant 1 : i32
    %0 = arith.muli %arg0, %c1_i32 : i32
    %1 = arith.addi %0, %arg1 : i32
    %c0_i32 = arith.constant 0 : i32
    %2 = arith.minsi %1, %c0_i32 : i32
    %c0_i32_0 = arith.constant 0 : i32
    %c0_i32_1 = arith.constant 0 : i32
    return %2, %c0_i32_0 : i32, i32
  }
  func.func @transform_2(%arg0: i32, %arg1: i32) -> (i32, i32) {
    %c0_i32 = arith.constant 0 : i32
    %c0_i32_0 = arith.constant 0 : i32
    return %arg0, %c0_i32 : i32, i32
  }
}

</mosaic_0001>

<llo_original>
// kernel: tpu_custom_call.1
$region0: #{tpu_custom_call.1}
  #allocation0 [shape = 'u32[]', space=smem, size = 0x4, offset = 0x4, fixed_abs, tag = 'smem constant byte address 0x4 - core index']
  #allocation1 [shape = 'u32[72,128]{1,0:T(1,128)}', space=vmem, size = 0x9000, scoped, tag = 'internal scratch']
  #allocation2 [shape = 'f32[1,256]{1,0:T(1,128)}', space=vmem, size = 0x400, scoped, tag = 'scratch operand']
  %s0 = inlined_call_operand.hbm [shape: f32[1,256], index: 0, kind: input, shape index: {}]
  %s1 = inlined_call_operand.hbm [shape: f32[1,256], index: 1, kind: input, shape index: {}]
  %s2 = inlined_call_operand.hbm [shape: f32[8,128], index: 2, kind: output, shape index: {}]
  %s3 = sld [smem:[#allocation0]]
  $region42: #{tpu_custom_call.1} parent=0
    _
  %s5 = ssub.s32 1, %s3
  %s6 = scalar_select 0, %s5, %s3
  $region1: #{tpu_custom_call.1} parent=0
    #allocation3 [shape = 'u8[1024]{0}', space=vmem, size = 0x400, scoped, tag = 'input window, operand 0, single buffered']
    #allocation4 [shape = 's32[1]{0}', space=sflag, size = 0x4, scoped, tag = 'scoped memory for tpu_custom_call.1']
    #allocation5 [shape = 's32[1]{0}', space=sflag, size = 0x4, scoped, tag = 'scoped memory for tpu_custom_call.1']
    #allocation6 [shape = 'u8[1024]{0}', space=vmem, size = 0x400, scoped, tag = 'input window, operand 1, single buffered']
    #allocation7 [shape = 's32[1]{0}', space=sflag, size = 0x4, scoped, tag = 'scoped memory for tpu_custom_call.1']
    #allocation8 [shape = 'u8[4096]{0}', space=vmem, size = 0x1000, scoped, tag = 'output window, operand 0, single buffered']
    %7 = vsyncpa [#allocation4], 0
    %8 = vsyncpa [#allocation7], 0
    %9 = vsyncpa [#allocation5], 0
    // Predicated region
    $region2: #{tpu_custom_call.1} parent=1 // pred_check
      _
    $region3: #{tpu_custom_call.1} parent=1 // pred_check_branch
      %11 = sbr.rel (0) target = $region5
    $region4: #{tpu_custom_call.1} parent=1 // pred_region
      %s12 = sadd.s32 0, 0
      %p13 = scmp.lt.s32.totalorder %s12, 0
      %s14 = scalar_select %p13, %s12, 0
      %16 = vsyncadd [#allocation4], 0
      %s17 = smul.addr %s14, 2
      %s18 = scalar_lea.hbm %s0, %s17
      %s20 = sshll.u32 %s18, 4
      %s21 = int_to_ptr.hbm [resolvable:$true] %s20
      %s22 = sshll.u32 [#allocation3], 4
      %s23 = int_to_ptr.vmem [resolvable:$true] %s22
      %25 = dma.hbm_to_vmem [thread:$0]  %s21, 32, %s23, [#allocation4]
    $region5: #{tpu_custom_call.1} parent=1 // pred_fallthru
      _
    // Predicated region
    $region6: #{tpu_custom_call.1} parent=1 // pred_check
      _
    $region7: #{tpu_custom_call.1} parent=1 // pred_check_branch
      %27 = sbr.rel (0) target = $region9
    $region8: #{tpu_custom_call.1} parent=1 // pred_region
      %s28 = sadd.s32 0, 0
      %p29 = scmp.lt.s32.totalorder %s28, 0
      %s30 = scalar_select %p29, %s28, 0
      %32 = vsyncadd [#allocation7], 0
      %s33 = smul.addr %s30, 2
      %s34 = scalar_lea.hbm %s1, %s33
      %s36 = sshll.u32 %s34, 4
      %s37 = int_to_ptr.hbm [resolvable:$true] %s36
      %s38 = sshll.u32 [#allocation6], 4
      %s39 = int_to_ptr.vmem [resolvable:$true] %s38
      %41 = dma.hbm_to_vmem [thread:$0]  %s37, 32, %s39, [#allocation7]
    $region9: #{tpu_custom_call.1} parent=1 // pred_fallthru
      _
    // Predicated region
    $region10: #{tpu_custom_call.1} parent=1 // pred_check
      _
    $region11: #{tpu_custom_call.1} parent=1 // pred_check_branch
      %43 = sbr.rel (0) target = $region13
    $region12: #{tpu_custom_call.1} parent=1 // pred_region
      %45 = dma.done [#allocation4], 32
    $region13: #{tpu_custom_call.1} parent=1 // pred_fallthru
      _
    // Predicated region
    $region14: #{tpu_custom_call.1} parent=1 // pred_check
      _
    $region15: #{tpu_custom_call.1} parent=1 // pred_check_branch
      %47 = sbr.rel (0) target = $region17
    $region16: #{tpu_custom_call.1} parent=1 // pred_region
      %49 = dma.done [#allocation7], 32
    $region17: #{tpu_custom_call.1} parent=1 // pred_fallthru
      _
    %s50 = sadd.s32 0, 0
    %p51 = scmp.lt.s32.totalorder %s50, 0
    %s52 = scalar_select %p51, %s50, 0
    %s53 = sadd.s32 0, 0
    %p54 = scmp.lt.s32.totalorder %s53, 0
    %s55 = scalar_select %p54, %s53, 0
    %p56 = scmp.eq.s32.totalorder 0, 0
    // Predicated region
    $region18: #{tpu_custom_call.1} parent=1 // pred_check
      %p57 = pneg %p56
    $region19: #{tpu_custom_call.1} parent=1 // pred_check_branch
      %59 = sbr.rel (%p57) target = $region21
    $region20: #{tpu_custom_call.1} parent=1 // pred_region
      %v60 = vlaneseq
      %vm61 = vcmp.ge.s32.totalorder %v60, 0
      %vm62 = vcmp.lt.s32.totalorder %v60, 256
      %vm63 = vmand %vm61, %vm62
      %64 = vst.msk [vmem:[#allocation2] sm:$0x3] %vm63, 0.0
    $region21: #{tpu_custom_call.1} parent=1 // pred_fallthru
      _
    %s65 = sadd.s32 0, 0
    %s66 = sadd.s32 %s65, 1
    %p67 = scmp.le.s32.totalorder %s66, 1
    // Predicated region
    $region22: #{tpu_custom_call.1} parent=1 // pred_check
      %p68 = pneg %p67
    $region23: #{tpu_custom_call.1} parent=1 // pred_check_branch
      %70 = sbr.rel (%p68) target = $region25
    $region24: #{tpu_custom_call.1} parent=1 // pred_region
      %v71 = vld [vmem:[#allocation6] sm:$0x3]
      %v72 = vld [vmem:[#allocation3] sm:$0x3]
      %v73 = vsub.f32 %v71, %v72
      %v74 = vand.u32 2147483647, %v73
      %v75 = vld [vmem:[#allocation2] sm:$0x3]
      %v76 = vadd.f32 %v74, 0.0
      %v77 = vadd.f32 %v75, %v76
      %v78 = vlaneseq
      %vm79 = vcmp.ge.s32.totalorder %v78, 0
      %vm80 = vcmp.lt.s32.totalorder %v78, 256
      %vm81 = vmand %vm79, %vm80
      %82 = vst.msk [vmem:[#allocation2] sm:$0x3] %vm81, %v77
    $region25: #{tpu_custom_call.1} parent=1 // pred_fallthru
      _
    %p83 = scmp.gt.s32.totalorder %s66, 1
    // Predicated region
    $region26: #{tpu_custom_call.1} parent=1 // pred_check
      %p84 = pneg %p83
    $region27: #{tpu_custom_call.1} parent=1 // pred_check_branch
      %86 = sbr.rel (%p84) target = $region29
    $region28: #{tpu_custom_call.1} parent=1 // pred_region
      %v87 = vld [vmem:[#allocation6] sm:$0x3]
      %v88 = vld [vmem:[#allocation3] sm:$0x3]
      %v89 = vsub.f32 %v87, %v88
      %v90 = vand.u32 2147483647, %v89
      %v91 = vlaneseq
      %v92 = vshrl.u32 %v91, 7
      %v93 = vstv %s65
      %v94 = vadd.s32 %v93, %v92
      %vm95 = vcmp.lt.s32.totalorder %v94, 1
      %v96 = vsel %vm95, 1, 0
      %vm97 = vcmp.eq.s32.totalorder %v96, 1
      %v99 = vperm.slane %v90, 0
      %v100 = vperm.slane %v90, 1
      %v103 = vsel %vm97, %v99, 0.0
      %v104 = vsel %vm97, %v100, 0.0
      %v105 = vld [vmem:[#allocation2] sm:$0x3]
      %v106 = vadd.f32 %v103, 0.0
      %v107 = vadd.f32 %v104, 0.0
      %v110 = vrot.slane %v107, 7
      %vm111 = vcmask 1040384
      %v112 = vsel %vm111, %v106, %v110
      %v114 = vadd.f32 %v105, %v112
      %v115 = vlaneseq
      %vm116 = vcmp.ge.s32.totalorder %v115, 0
      %vm117 = vcmp.lt.s32.totalorder %v115, 256
      %vm118 = vmand %vm116, %vm117
      %119 = vst.msk [vmem:[#allocation2] sm:$0x3] %vm118, %v114
    $region29: #{tpu_custom_call.1} parent=1 // pred_fallthru
      _
    // Predicated region
    $region30: #{tpu_custom_call.1} parent=1 // pred_check
      %p120 = pneg %p56
    $region31: #{tpu_custom_call.1} parent=1 // pred_check_branch
      %122 = sbr.rel (%p120) target = $region33
    $region32: #{tpu_custom_call.1} parent=1 // pred_region
      %v123 = vld [vmem:[#allocation2] sm:$0x3]
      %v125 = vperm.slane %v123, 0
      %v126 = vperm.slane %v123, 1
      %vm129 = vcmask 1040384
      %v130 = vsel %vm129, %v125, 0.0
      %v131 = vsel %vm129, %v126, 0.0
      %v132 = vadd.f32 %v130, %v131
      %133 = vadd.xlane.f32.xlu0 %v132
      %v134 = vpop.xlane.xlu0 %133
      %v135 = vrot.slane %v134, 4
      %v136 = vadd.f32 %v134, %v135
      %v137 = vrot.slane %v136, 2
      %v138 = vadd.f32 %v136, %v137
      %v139 = vrot.slane %v138, 1
      %v140 = vadd.f32 %v138, %v139
      %s141 = vtos %v140
      %v142 = vstv %s141
      %v143 = vadd.f32 %v142, 0.0
      %144 = vst [vmem:[#allocation8] sm:$0xff] %v143
    $region33: #{tpu_custom_call.1} parent=1 // pred_fallthru
      _
    // Predicated region
    $region34: #{tpu_custom_call.1} parent=1 // pred_check
      _
    $region35: #{tpu_custom_call.1} parent=1 // pred_check_branch
      %146 = sbr.rel (0) target = $region37
    $region36: #{tpu_custom_call.1} parent=1 // pred_region
      %148 = vsyncadd [#allocation5], 0
      %s150 = sshll.u32 [#allocation8], 4
      %s151 = int_to_ptr.vmem [resolvable:$true] %s150
      %s152 = sshll.u32 %s2, 4
      %s153 = int_to_ptr.hbm [resolvable:$true] %s152
      %155 = dma.vmem_to_hbm [thread:$0]  %s151, 128, %s153, [#allocation5]
    $region37: #{tpu_custom_call.1} parent=1 // pred_fallthru
      _
    // Predicated region
    $region38: #{tpu_custom_call.1} parent=1 // pred_check
      _
    $region39: #{tpu_custom_call.1} parent=1 // pred_check_branch
      %157 = sbr.rel (0) target = $region41
    $region40: #{tpu_custom_call.1} parent=1 // pred_region
      %159 = dma.done [#allocation5], 128
    $region41: #{tpu_custom_call.1} parent=1 // pred_fallthru
      _
    %160 = vsyncpa [#allocation4], 1
    %161 = vsyncpa [#allocation7], 1
    %162 = vsyncpa [#allocation5], 1

</llo_original>
